<compile_context>
chip_gen: v7x
topology: tpu7x:2x2x1
jax: 0.10.0
libtpu: 0.0.40
codegen_flags: <defaults>
</compile_context>

<pallas_src>
import functools

import jax
import jax.numpy as jnp
from jax import lax
from jax.experimental import pallas as pl
from jax.experimental.pallas import tpu as pltpu

LANE = 128


def _round_up(x, m):
    return (x + m - 1) // m * m


# ----------------------------------------------------------------------------
# Pallas kernel
# ----------------------------------------------------------------------------
def _make_block_kernel(Nb, H, W, Cin, Pp, Coutp, stride, has_shortcut):
    Ho = (H - 1) // stride + 1
    Wo = (W - 1) // stride + 1
    M_in = Nb * H * W

    def kernel(*refs):
        x_ref, w1_ref, b1_ref, dw_ref, b2_ref, w3_ref, b3_ref = refs[:7]
        idx = 7
        ws_ref = None
        if has_shortcut:
            ws_ref = refs[idx]
            idx += 1
        o_ref = refs[idx]
        idx += 1
        sub_ref = refs[idx] if stride == 2 else None

        # ---- expand 1x1 conv (BN scale folded into w1): bf16 MXU, f32 acc --
        x2d = x_ref[...].reshape(M_in, Cin).astype(jnp.bfloat16)
        h1 = jnp.dot(x2d, w1_ref[...], preferred_element_type=jnp.float32)
        h1 = jnp.maximum(h1 + b1_ref[0], 0.0)
        h1 = h1.reshape(Nb, H, W, Pp)

        # ---- depthwise 3x3 (pad=1), BN scale folded into the taps ----------
        # Taps are streamed one at a time so only one shifted copy of h1 is
        # live: row offsets via a per-kh slice/concat on a major axis, column
        # offsets via an XLU sublane roll + iota edge masks.
        col = lax.broadcasted_iota(jnp.int32, (W, 1), 0)
        left_ok = col >= 1           # valid when reading column j-1
        right_ok = col <= W - 2      # valid when reading column j+1

        acc = h1 * dw_ref[4] + b2_ref[0]              # center tap + BN bias
        zrow = jnp.zeros((Nb, 1, W, Pp), jnp.float32)
        for kh in range(3):
            if kh == 0:
                rows = jnp.concatenate([zrow, h1[:, :H - 1]], axis=1)
            elif kh == 2:
                rows = jnp.concatenate([h1[:, 1:], zrow], axis=1)
            else:
                rows = h1
            flat = rows.reshape(Nb * H, W, Pp)
            for kw in range(3):
                if kh == 1 and kw == 1:
                    continue                           # center tap done above
                if kw == 0:
                    t = jnp.where(
                        left_ok,
                        pltpu.roll(flat, 1, 1).reshape(Nb, H, W, Pp), 0.0)
                elif kw == 2:
                    t = jnp.where(
                        right_ok,
                        pltpu.roll(flat, W - 1, 1).reshape(Nb, H, W, Pp), 0.0)
                else:
                    t = rows
                acc = acc + t * dw_ref[kh * 3 + kw]
        h2 = jnp.maximum(acc, 0.0)                     # (Nb, H, W, Pp) f32
        # TODO(synk): run the taps in bf16 on v6e/v7x to halve vreg pressure.

        # ---- project 1x1 conv (BN scale folded into w3): bf16 MXU ----------
        h2m = h2.reshape(M_in, Pp).astype(jnp.bfloat16)
        h3 = jnp.dot(h2m, w3_ref[...], preferred_element_type=jnp.float32)

        if stride == 1:
            h3 = h3 + b3_ref[0]
            if has_shortcut:
                # Re-issue the (tiny-K) shortcut matmul here instead of keeping
                # an (M, Coutp) value live across the depthwise section.
                xs = x_ref[...].reshape(M_in, Cin).astype(jnp.bfloat16)
                h3 = h3 + jnp.dot(xs, ws_ref[...],
                                  preferred_element_type=jnp.float32)
            o_ref[...] = h3.reshape(Nb, Ho, Wo, Coutp)   # lane-dense store
        else:
            # TODO(synk): phase-split taps would avoid the extra MACs on the
            # discarded odd rows/cols; here the full-res projection goes
            # through one VMEM scratch and the even phase is read back with
            # strided pl.ds slices (all value reshapes stay tile-aligned).
            sub_ref[...] = h3.reshape(Nb, H, W, Coutp)
            o_ref[...] = (sub_ref[:, pl.ds(0, Ho, 2), pl.ds(0, Wo, 2), :]
                          + b3_ref[0])

    return kernel


# ----------------------------------------------------------------------------
# Wrapper helpers
# ----------------------------------------------------------------------------
def _num_tensorcores():
    """Best-effort TensorCores-per-chip (2 on megacore/v7x, 1 on v5e/v6e)."""
    try:
        info = pltpu.get_tpu_info()
        for name in ("num_cores", "core_count", "num_tensorcores",
                     "tensorcore_count", "tensor_core_count"):
            v = getattr(info, name, None)
            if v:
                return max(1, int(v))
    except Exception:
        pass
    return 2     # conservative default: keep >=2 grid steps


def _pick_batch_tile(N, H, W):
    """Images per grid step: fill the MXU M dimension; on 2-TensorCore chips
    keep >= 2 grid steps so both cores get work, on 1-TC chips go bigger."""
    ncores = _num_tensorcores()
    target_rows = 256 if ncores >= 2 else 512
    nb = 1
    for cand in range(1, N + 1):
        if N % cand:
            continue
        if ncores >= 2 and N >= 2 and N // cand < 2:
            continue
        nb = cand
        if cand * H * W >= target_rows:
            break
    return nb


def _vmem_limit_bytes(fparams, Nb, H, W, Cin, Pp, Coutp, Ho, Wo, stride):
    def nbytes(a):
        return int(a.size) * a.dtype.itemsize

    x_blk = Nb * H * W * Cin * 4
    out_blk = Nb * Ho * Wo * Coutp * 4
    weights = sum(nbytes(v) for v in fparams.values())
    scratch = Nb * H * W * Coutp * 4 if stride == 2 else 0
    temps = 8 * Nb * H * W * max(Pp, Coutp) * 4     # h1/acc/tap/h3 + spill room
    total = 2 * (x_blk + out_blk) + 2 * weights + scratch + temps
    return int(min(max(total, 32 * 1024 * 1024), 64 * 1024 * 1024))


def prepare_block_params(params, *, stride):
    """One-time wrapper work: fold BN scales into the conv weights, cast the
    MXU weights to bf16, and zero-pad the channel dims to 128 lanes."""
    Cin, P = params["w1"].shape
    Cout = params["w3"].shape[1]
    Pp = _round_up(P, LANE)
    Coutp = _round_up(Cout, LANE)

    def pad_cols(a, n):
        return jnp.pad(a, ((0, 0), (0, n - a.shape[1])))

    fp = {
        "w1": pad_cols(params["w1"] * params["s1"], Pp).astype(jnp.bfloat16),
        "b1": pad_cols(params["b1"], Pp),
        "dw": pad_cols(params["dw"].reshape(9, P) * params["s2"], Pp),
        "b2": pad_cols(params["b2"], Pp),
        "w3": jnp.pad(params["w3"] * params["s3"],
                      ((0, Pp - P), (0, Coutp - Cout))).astype(jnp.bfloat16),
    }
    b3 = params["b3"]
    if stride == 1:
        if "ws" in params:
            wsf = params["ws"] * params["ss"]
            b3 = b3 + params["bs"]          # shortcut BN bias folded into b3
        else:
            assert Cin == Cout, "identity shortcut needs in_planes == out_planes"
            wsf = jnp.eye(Cin, Cout, dtype=jnp.float32)
        fp["ws"] = pad_cols(wsf, Coutp).astype(jnp.bfloat16)
    fp["b3"] = pad_cols(b3, Coutp)
    return fp


def block_forward(x_nhwc, fparams, *, stride, out_channels, slice_output=True):
    """Forward pass.  x_nhwc: (N, H, W, Cin) float32, channels-last.

    With slice_output=False the zero-padded (..., Coutp) output is returned so
    chained blocks can stay in the 128-lane-padded layout (pad Cin once at the
    network edge instead of slicing/re-padding per block)."""
    N, H, W, Cin = x_nhwc.shape
    Pp = fparams["b1"].shape[1]
    Coutp = fparams["b3"].shape[1]
    if stride == 2:
        assert H % 2 == 0 and W % 2 == 0, "stride-2 path assumes even H, W"
        # TODO(synk): odd spatial sizes need a different even-phase extraction.
    Ho = (H - 1) // stride + 1
    Wo = (W - 1) // stride + 1
    has_shortcut = stride == 1

    Nb = _pick_batch_tile(N, H, W)
    grid = (N // Nb,)

    kernel = _make_block_kernel(Nb, H, W, Cin, Pp, Coutp, stride, has_shortcut)

    def rep(arr):                          # replicated (grid-invariant) operand
        nd = arr.ndim
        return pl.BlockSpec(arr.shape, lambda n, _nd=nd: (0,) * _nd)
    # TODO(synk): pipeline_mode=pl.Buffered(1) on the weight specs would drop
    # their second pipeline buffer (matters under v7x's 64 MiB VMEM).

    operands = [x_nhwc.astype(jnp.float32), fparams["w1"], fparams["b1"],
                fparams["dw"], fparams["b2"], fparams["w3"], fparams["b3"]]
    in_specs = [pl.BlockSpec((Nb, H, W, Cin), lambda n: (n, 0, 0, 0)),
                rep(fparams["w1"]), rep(fparams["b1"]), rep(fparams["dw"]),
                rep(fparams["b2"]), rep(fparams["w3"]), rep(fparams["b3"])]
    if has_shortcut:
        operands.append(fparams["ws"])
        in_specs.append(rep(fparams["ws"]))

    scratch_shapes = []
    if stride == 2:
        scratch_shapes.append(pltpu.VMEM((Nb, H, W, Coutp), jnp.float32))

    out = pl.pallas_call(
        kernel,
        out_shape=jax.ShapeDtypeStruct((N, Ho, Wo, Coutp), jnp.float32),
        grid=grid,
        in_specs=in_specs,
        out_specs=pl.BlockSpec((Nb, Ho, Wo, Coutp), lambda n: (n, 0, 0, 0)),
        scratch_shapes=scratch_shapes,
        compiler_params=pltpu.CompilerParams(
            dimension_semantics=("parallel",),
            vmem_limit_bytes=_vmem_limit_bytes(
                fparams, Nb, H, W, Cin, Pp, Coutp, Ho, Wo, stride)),
    )(*operands)

    # TODO(synk): row-strip tiling with a 1-row halo for large images on v7x.
    if slice_output:
        out = out[..., :out_channels]       # drop zero-padded output channels
    return out


# ----------------------------------------------------------------------------
# Deterministic parameter init (synthetic weights, folded BN running stats)
# ----------------------------------------------------------------------------
def _fold_bn(gamma, beta, mean, var, eps=1e-5):
    scale = gamma / jnp.sqrt(var + eps)
    bias = beta - mean * scale
    return scale[None, :], bias[None, :]


def init_block_params(key, in_planes, out_planes, expansion, stride):
    P = expansion * in_planes
    ks = jax.random.split(key, 8)

    def bn(k, c):
        k1, k2, k3, k4 = jax.random.split(k, 4)
        gamma = 1.0 + 0.1 * jax.random.normal(k1, (c,), jnp.float32)
        beta = 0.05 * jax.random.normal(k2, (c,), jnp.float32)
        mean = 0.1 * jax.random.normal(k3, (c,), jnp.float32)
        var = 1.0 + 0.5 * jax.random.uniform(k4, (c,), jnp.float32)
        return _fold_bn(gamma, beta, mean, var)

    params = {
        "w1": 0.2 * jax.random.normal(ks[0], (in_planes, P), jnp.float32),
        "dw": 0.2 * jax.random.normal(ks[2], (3, 3, P), jnp.float32),
        "w3": 0.2 * jax.random.normal(ks[4], (P, out_planes), jnp.float32),
    }
    params["s1"], params["b1"] = bn(ks[1], P)
    params["s2"], params["b2"] = bn(ks[3], P)
    params["s3"], params["b3"] = bn(ks[5], out_planes)
    if stride == 1 and in_planes != out_planes:
        params["ws"] = 0.2 * jax.random.normal(ks[6], (in_planes, out_planes),
                                               jnp.float32)
        params["ss"], params["bs"] = bn(ks[7], out_planes)
    return params


# ----------------------------------------------------------------------------
# Pure-JAX references (NHWC) for correctness checks
# ----------------------------------------------------------------------------
def ref_forward(x_nhwc, params, *, stride):
    """f32 reference with the PyTorch Block's semantics (inference BN)."""
    HI = lax.Precision.HIGHEST
    P = params["w1"].shape[1]
    h1 = jnp.einsum("nhwc,cp->nhwp", x_nhwc, params["w1"], precision=HI)
    h1 = jnp.maximum(h1 * params["s1"][0] + params["b1"][0], 0.0)
    dw = params["dw"].reshape(3, 3, 1, P)
    h2 = lax.conv_general_dilated(
        h1, dw, window_strides=(stride, stride), padding=((1, 1), (1, 1)),
        dimension_numbers=("NHWC", "HWIO", "NHWC"), feature_group_count=P,
        precision=HI)
    h2 = jnp.maximum(h2 * params["s2"][0] + params["b2"][0], 0.0)
    h3 = jnp.einsum("nhwp,po->nhwo", h2, params["w3"], precision=HI)
    h3 = h3 * params["s3"][0] + params["b3"][0]
    if stride == 1:
        if "ws" in params:
            sc = jnp.einsum("nhwc,co->nhwo", x_nhwc, params["ws"], precision=HI)
            sc = sc * params["ss"][0] + params["bs"][0]
        else:
            sc = x_nhwc
        h3 = h3 + sc
    return h3


def folded_ref(x_nhwc, fp, *, stride):
    """Mirror of the kernel math (folded BN, bf16 matmul inputs, f32 acc) in
    plain JAX; used for the tight numerical check."""
    x_m = x_nhwc.astype(jnp.bfloat16)
    h1 = jnp.einsum("nhwc,cp->nhwp", x_m, fp["w1"],
                    preferred_element_type=jnp.float32)
    h1 = jnp.maximum(h1 + fp["b1"][0], 0.0)
    Pp = h1.shape[-1]
    dw = fp["dw"].reshape(3, 3, 1, Pp)
    h2 = lax.conv_general_dilated(
        h1, dw, window_strides=(stride, stride), padding=((1, 1), (1, 1)),
        dimension_numbers=("NHWC", "HWIO", "NHWC"), feature_group_count=Pp,
        precision=lax.Precision.HIGHEST)
    h2 = jnp.maximum(h2 + fp["b2"][0], 0.0)
    h3 = jnp.einsum("nhwp,po->nhwo", h2.astype(jnp.bfloat16), fp["w3"],
                    preferred_element_type=jnp.float32)
    h3 = h3 + fp["b3"][0]
    if stride == 1:
        h3 = h3 + jnp.einsum("nhwc,co->nhwo", x_m, fp["ws"],
                             preferred_element_type=jnp.float32)
    return h3


# ----------------------------------------------------------------------------
if __name__ == "__main__":
    key = jax.random.PRNGKey(0)
    N, H, W = 2, 8, 8

    configs = [
        # (Cin, Cout, expansion, stride)
        (8, 16, 4, 1),     # conv shortcut (in_planes != out_planes)
        (16, 16, 2, 1),    # identity shortcut
        (16, 24, 4, 2),    # stride 2, no shortcut
    ]
    for idx, (cin, cout, exp, st) in enumerate(configs):
        kx = jax.random.fold_in(key, 2 * idx)
        kp = jax.random.fold_in(key, 2 * idx + 1)
        x = jax.random.normal(kx, (N, H, W, cin), jnp.float32)        # NHWC
        params = init_block_params(kp, cin, cout, exp, st)
        fparams = prepare_block_params(params, stride=st)

        fwd = jax.jit(functools.partial(block_forward, stride=st,
                                        out_channels=cout))
        y = jax.block_until_ready(fwd(x, fparams))

        y_tight = folded_ref(x, fparams, stride=st)[..., :cout]
        y_loose = ref_forward(x, params, stride=st)
        assert y.shape == y_loose.shape, (y.shape, y_loose.shape)
        err_t = float(jnp.max(jnp.abs(y - y_tight)))
        err_l = float(jnp.max(jnp.abs(y - y_loose)))
        assert jnp.allclose(y, y_tight, atol=1e-2, rtol=1e-2), \
            ("config", idx, "tight mirror mismatch", err_t)
        assert jnp.allclose(y, y_loose, atol=6e-2, rtol=6e-2), \
            ("config", idx, "f32 reference mismatch (bf16 drift budget)", err_l)

    print("KERNEL_OK")
</pallas_src>

<mosaic_0001>
module attributes {stable_mosaic.version = 11 : i64} {
  func.func @kernel(%arg0: i32, %arg1: memref<1x8x8x8xf32, #tpu.memory_space<vmem>>, %arg2: memref<8x128xbf16, #tpu.memory_space<vmem>>, %arg3: memref<1x128xf32, #tpu.memory_space<vmem>>, %arg4: memref<9x128xf32, #tpu.memory_space<vmem>>, %arg5: memref<1x128xf32, #tpu.memory_space<vmem>>, %arg6: memref<128x128xbf16, #tpu.memory_space<vmem>>, %arg7: memref<1x128xf32, #tpu.memory_space<vmem>>, %arg8: memref<8x128xbf16, #tpu.memory_space<vmem>>, %arg9: memref<1x8x8x128xf32, #tpu.memory_space<vmem>>) attributes {dimension_semantics = [#tpu.dimension_semantics<parallel>], iteration_bounds = array<i64: 2>, scalar_prefetch = 0 : i64, scratch_operands = 0 : i64, tpu.core_type = #tpu.core_type<tc>, window_params = [{transform_indices = @transform_0, window_bounds = array<i64: 1, 8, 8, 8>}, {pipeline_mode = #tpu.pipeline_mode<synchronous>, transform_indices = @transform_1, window_bounds = array<i64: 8, 128>}, {pipeline_mode = #tpu.pipeline_mode<synchronous>, transform_indices = @transform_2, window_bounds = array<i64: 1, 128>}, {pipeline_mode = #tpu.pipeline_mode<synchronous>, transform_indices = @transform_3, window_bounds = array<i64: 9, 128>}, {pipeline_mode = #tpu.pipeline_mode<synchronous>, transform_indices = @transform_4, window_bounds = array<i64: 1, 128>}, {pipeline_mode = #tpu.pipeline_mode<synchronous>, transform_indices = @transform_5, window_bounds = array<i64: 128, 128>}, {pipeline_mode = #tpu.pipeline_mode<synchronous>, transform_indices = @transform_6, window_bounds = array<i64: 1, 128>}, {pipeline_mode = #tpu.pipeline_mode<synchronous>, transform_indices = @transform_7, window_bounds = array<i64: 8, 128>}, {transform_indices = @transform_8, window_bounds = array<i64: 1, 8, 8, 128>}]} {
    %c0 = arith.constant 0 : index
    %c0_0 = arith.constant 0 : index
    %c0_1 = arith.constant 0 : index
    %c0_2 = arith.constant 0 : index
    %0 = vector.load %arg1[%c0, %c0_0, %c0_1, %c0_2] : memref<1x8x8x8xf32, #tpu.memory_space<vmem>>, vector<1x8x8x8xf32>
    %1 = vector.shape_cast %0 : vector<1x8x8x8xf32> to vector<64x8xf32>
    %2 = arith.truncf %1 : vector<64x8xf32> to vector<64x8xbf16>
    %c0_3 = arith.constant 0 : index
    %c0_4 = arith.constant 0 : index
    %3 = vector.load %arg2[%c0_3, %c0_4] : memref<8x128xbf16, #tpu.memory_space<vmem>>, vector<8x128xbf16>
    %cst = arith.constant dense<0.000000e+00> : vector<64x128xf32>
    %4 = tpu.matmul %2, %3, %cst {dimension_numbers = #tpu.dot_dimension_numbers<[1], [0], [0], [1], [0, 0, 1, 1], [], []>} : vector<64x8xbf16>, vector<8x128xbf16>, vector<64x128xf32> -> vector<64x128xf32>
    %c0_5 = arith.constant 0 : index
    %c0_6 = arith.constant 0 : index
    %5 = vector.load %arg3[%c0_5, %c0_6] : memref<1x128xf32, #tpu.memory_space<vmem>>, vector<1x128xf32>
    %6 = vector.shape_cast %5 : vector<1x128xf32> to vector<128xf32>
    %7 = vector.shape_cast %6 : vector<128xf32> to vector<1x128xf32>
    %8 = vector.broadcast %7 : vector<1x128xf32> to vector<64x128xf32>
    %9 = arith.addf %4, %8 : vector<64x128xf32>
    %cst_7 = arith.constant 0.000000e+00 : f32
    %10 = vector.broadcast %cst_7 : f32 to vector<64x128xf32>
    %11 = arith.maximumf %9, %10 : vector<64x128xf32>
    %12 = vector.shape_cast %11 : vector<64x128xf32> to vector<1x8x8x128xf32>
    %13 = tpu.iota {dimensions = array<i32: 0>} : vector<8x1xi32>
    %c1_i32 = arith.constant 1 : i32
    %14 = vector.broadcast %c1_i32 : i32 to vector<8x1xi32>
    %15 = arith.cmpi sge, %13, %14 : vector<8x1xi32>
    %c6_i32 = arith.constant 6 : i32
    %16 = vector.broadcast %c6_i32 : i32 to vector<8x1xi32>
    %17 = arith.cmpi sle, %13, %16 : vector<8x1xi32>
    %c4 = arith.constant 4 : index
    %c0_8 = arith.constant 0 : index
    %18 = vector.load %arg4[%c4, %c0_8] : memref<9x128xf32, #tpu.memory_space<vmem>>, vector<1x128xf32>
    %19 = vector.shape_cast %18 : vector<1x128xf32> to vector<128xf32>
    %20 = vector.shape_cast %19 : vector<128xf32> to vector<1x1x1x128xf32>
    %21 = vector.broadcast %20 : vector<1x1x1x128xf32> to vector<1x8x8x128xf32>
    %22 = arith.mulf %12, %21 : vector<1x8x8x128xf32>
    %c0_9 = arith.constant 0 : index
    %c0_10 = arith.constant 0 : index
    %23 = vector.load %arg5[%c0_9, %c0_10] : memref<1x128xf32, #tpu.memory_space<vmem>>, vector<1x128xf32>
    %24 = vector.shape_cast %23 : vector<1x128xf32> to vector<128xf32>
    %25 = vector.shape_cast %24 : vector<128xf32> to vector<1x1x1x128xf32>
    %26 = vector.broadcast %25 : vector<1x1x1x128xf32> to vector<1x8x8x128xf32>
    %27 = arith.addf %22, %26 : vector<1x8x8x128xf32>
    %cst_11 = arith.constant 0.000000e+00 : f32
    %28 = vector.broadcast %cst_11 : f32 to vector<1x1x8x128xf32>
    %29 = vector.extract_strided_slice %12 {offsets = [0, 0, 0, 0], sizes = [1, 7, 8, 128], strides = [1, 1, 1, 1]} : vector<1x8x8x128xf32> to vector<1x7x8x128xf32>
    %30 = tpu.concatenate %28, %29 in 1 : vector<1x1x8x128xf32>, vector<1x7x8x128xf32> -> vector<1x8x8x128xf32>
    %31 = vector.shape_cast %30 : vector<1x8x8x128xf32> to vector<8x8x128xf32>
    %c1_i32_12 = arith.constant 1 : i32
    %32 = tpu.dynamic_rotate %31 by %c1_i32_12 dim 1 : vector<8x8x128xf32>, i32 -> vector<8x8x128xf32>
    %33 = vector.shape_cast %32 : vector<8x8x128xf32> to vector<1x8x8x128xf32>
    %cst_13 = arith.constant 0.000000e+00 : f32
    %34 = vector.shape_cast %15 : vector<8x1xi1> to vector<1x1x8x1xi1>
    %35 = vector.broadcast %34 : vector<1x1x8x1xi1> to vector<1x8x8x128xi1>
    %36 = vector.broadcast %cst_13 : f32 to vector<1x8x8x128xf32>
    %37 = arith.select %35, %33, %36 : vector<1x8x8x128xi1>, vector<1x8x8x128xf32>
    %c0_14 = arith.constant 0 : index
    %c0_15 = arith.constant 0 : index
    %38 = vector.load %arg4[%c0_14, %c0_15] : memref<9x128xf32, #tpu.memory_space<vmem>>, vector<1x128xf32>
    %39 = vector.shape_cast %38 : vector<1x128xf32> to vector<128xf32>
    %40 = vector.shape_cast %39 : vector<128xf32> to vector<1x1x1x128xf32>
    %41 = vector.broadcast %40 : vector<1x1x1x128xf32> to vector<1x8x8x128xf32>
    %42 = arith.mulf %37, %41 : vector<1x8x8x128xf32>
    %43 = arith.addf %27, %42 : vector<1x8x8x128xf32>
    %c1 = arith.constant 1 : index
    %c0_16 = arith.constant 0 : index
    %44 = vector.load %arg4[%c1, %c0_16] : memref<9x128xf32, #tpu.memory_space<vmem>>, vector<1x128xf32>
    %45 = vector.shape_cast %44 : vector<1x128xf32> to vector<128xf32>
    %46 = vector.shape_cast %45 : vector<128xf32> to vector<1x1x1x128xf32>
    %47 = vector.broadcast %46 : vector<1x1x1x128xf32> to vector<1x8x8x128xf32>
    %48 = arith.mulf %30, %47 : vector<1x8x8x128xf32>
    %49 = arith.addf %43, %48 : vector<1x8x8x128xf32>
    %c7_i32 = arith.constant 7 : i32
    %50 = tpu.dynamic_rotate %31 by %c7_i32 dim 1 : vector<8x8x128xf32>, i32 -> vector<8x8x128xf32>
    %51 = vector.shape_cast %50 : vector<8x8x128xf32> to vector<1x8x8x128xf32>
    %cst_17 = arith.constant 0.000000e+00 : f32
    %52 = vector.shape_cast %17 : vector<8x1xi1> to vector<1x1x8x1xi1>
    %53 = vector.broadcast %52 : vector<1x1x8x1xi1> to vector<1x8x8x128xi1>
    %54 = vector.broadcast %cst_17 : f32 to vector<1x8x8x128xf32>
    %55 = arith.select %53, %51, %54 : vector<1x8x8x128xi1>, vector<1x8x8x128xf32>
    %c2 = arith.constant 2 : index
    %c0_18 = arith.constant 0 : index
    %56 = vector.load %arg4[%c2, %c0_18] : memref<9x128xf32, #tpu.memory_space<vmem>>, vector<1x128xf32>
    %57 = vector.shape_cast %56 : vector<1x128xf32> to vector<128xf32>
    %58 = vector.shape_cast %57 : vector<128xf32> to vector<1x1x1x128xf32>
    %59 = vector.broadcast %58 : vector<1x1x1x128xf32> to vector<1x8x8x128xf32>
    %60 = arith.mulf %55, %59 : vector<1x8x8x128xf32>
    %61 = arith.addf %49, %60 : vector<1x8x8x128xf32>
    %62 = vector.shape_cast %12 : vector<1x8x8x128xf32> to vector<8x8x128xf32>
    %c1_i32_19 = arith.constant 1 : i32
    %63 = tpu.dynamic_rotate %62 by %c1_i32_19 dim 1 : vector<8x8x128xf32>, i32 -> vector<8x8x128xf32>
    %64 = vector.shape_cast %63 : vector<8x8x128xf32> to vector<1x8x8x128xf32>
    %cst_20 = arith.constant 0.000000e+00 : f32
    %65 = vector.shape_cast %15 : vector<8x1xi1> to vector<1x1x8x1xi1>
    %66 = vector.broadcast %65 : vector<1x1x8x1xi1> to vector<1x8x8x128xi1>
    %67 = vector.broadcast %cst_20 : f32 to vector<1x8x8x128xf32>
    %68 = arith.select %66, %64, %67 : vector<1x8x8x128xi1>, vector<1x8x8x128xf32>
    %c3 = arith.constant 3 : index
    %c0_21 = arith.constant 0 : index
    %69 = vector.load %arg4[%c3, %c0_21] : memref<9x128xf32, #tpu.memory_space<vmem>>, vector<1x128xf32>
    %70 = vector.shape_cast %69 : vector<1x128xf32> to vector<128xf32>
    %71 = vector.shape_cast %70 : vector<128xf32> to vector<1x1x1x128xf32>
    %72 = vector.broadcast %71 : vector<1x1x1x128xf32> to vector<1x8x8x128xf32>
    %73 = arith.mulf %68, %72 : vector<1x8x8x128xf32>
    %74 = arith.addf %61, %73 : vector<1x8x8x128xf32>
    %c7_i32_22 = arith.constant 7 : i32
    %75 = tpu.dynamic_rotate %62 by %c7_i32_22 dim 1 : vector<8x8x128xf32>, i32 -> vector<8x8x128xf32>
    %76 = vector.shape_cast %75 : vector<8x8x128xf32> to vector<1x8x8x128xf32>
    %cst_23 = arith.constant 0.000000e+00 : f32
    %77 = vector.shape_cast %17 : vector<8x1xi1> to vector<1x1x8x1xi1>
    %78 = vector.broadcast %77 : vector<1x1x8x1xi1> to vector<1x8x8x128xi1>
    %79 = vector.broadcast %cst_23 : f32 to vector<1x8x8x128xf32>
    %80 = arith.select %78, %76, %79 : vector<1x8x8x128xi1>, vector<1x8x8x128xf32>
    %c5 = arith.constant 5 : index
    %c0_24 = arith.constant 0 : index
    %81 = vector.load %arg4[%c5, %c0_24] : memref<9x128xf32, #tpu.memory_space<vmem>>, vector<1x128xf32>
    %82 = vector.shape_cast %81 : vector<1x128xf32> to vector<128xf32>
    %83 = vector.shape_cast %82 : vector<128xf32> to vector<1x1x1x128xf32>
    %84 = vector.broadcast %83 : vector<1x1x1x128xf32> to vector<1x8x8x128xf32>
    %85 = arith.mulf %80, %84 : vector<1x8x8x128xf32>
    %86 = arith.addf %74, %85 : vector<1x8x8x128xf32>
    %87 = vector.extract_strided_slice %12 {offsets = [0, 1, 0, 0], sizes = [1, 7, 8, 128], strides = [1, 1, 1, 1]} : vector<1x8x8x128xf32> to vector<1x7x8x128xf32>
    %88 = tpu.concatenate %87, %28 in 1 : vector<1x7x8x128xf32>, vector<1x1x8x128xf32> -> vector<1x8x8x128xf32>
    %89 = vector.shape_cast %88 : vector<1x8x8x128xf32> to vector<8x8x128xf32>
    %c1_i32_25 = arith.constant 1 : i32
    %90 = tpu.dynamic_rotate %89 by %c1_i32_25 dim 1 : vector<8x8x128xf32>, i32 -> vector<8x8x128xf32>
    %91 = vector.shape_cast %90 : vector<8x8x128xf32> to vector<1x8x8x128xf32>
    %cst_26 = arith.constant 0.000000e+00 : f32
    %92 = vector.shape_cast %15 : vector<8x1xi1> to vector<1x1x8x1xi1>
    %93 = vector.broadcast %92 : vector<1x1x8x1xi1> to vector<1x8x8x128xi1>
    %94 = vector.broadcast %cst_26 : f32 to vector<1x8x8x128xf32>
    %95 = arith.select %93, %91, %94 : vector<1x8x8x128xi1>, vector<1x8x8x128xf32>
    %c6 = arith.constant 6 : index
    %c0_27 = arith.constant 0 : index
    %96 = vector.load %arg4[%c6, %c0_27] : memref<9x128xf32, #tpu.memory_space<vmem>>, vector<1x128xf32>
    %97 = vector.shape_cast %96 : vector<1x128xf32> to vector<128xf32>
    %98 = vector.shape_cast %97 : vector<128xf32> to vector<1x1x1x128xf32>
    %99 = vector.broadcast %98 : vector<1x1x1x128xf32> to vector<1x8x8x128xf32>
    %100 = arith.mulf %95, %99 : vector<1x8x8x128xf32>
    %101 = arith.addf %86, %100 : vector<1x8x8x128xf32>
    %c7 = arith.constant 7 : index
    %c0_28 = arith.constant 0 : index
    %102 = vector.load %arg4[%c7, %c0_28] : memref<9x128xf32, #tpu.memory_space<vmem>>, vector<1x128xf32>
    %103 = vector.shape_cast %102 : vector<1x128xf32> to vector<128xf32>
    %104 = vector.shape_cast %103 : vector<128xf32> to vector<1x1x1x128xf32>
    %105 = vector.broadcast %104 : vector<1x1x1x128xf32> to vector<1x8x8x128xf32>
    %106 = arith.mulf %88, %105 : vector<1x8x8x128xf32>
    %107 = arith.addf %101, %106 : vector<1x8x8x128xf32>
    %c7_i32_29 = arith.constant 7 : i32
    %108 = tpu.dynamic_rotate %89 by %c7_i32_29 dim 1 : vector<8x8x128xf32>, i32 -> vector<8x8x128xf32>
    %109 = vector.shape_cast %108 : vector<8x8x128xf32> to vector<1x8x8x128xf32>
    %cst_30 = arith.constant 0.000000e+00 : f32
    %110 = vector.shape_cast %17 : vector<8x1xi1> to vector<1x1x8x1xi1>
    %111 = vector.broadcast %110 : vector<1x1x8x1xi1> to vector<1x8x8x128xi1>
    %112 = vector.broadcast %cst_30 : f32 to vector<1x8x8x128xf32>
    %113 = arith.select %111, %109, %112 : vector<1x8x8x128xi1>, vector<1x8x8x128xf32>
    %c8 = arith.constant 8 : index
    %c0_31 = arith.constant 0 : index
    %114 = vector.load %arg4[%c8, %c0_31] : memref<9x128xf32, #tpu.memory_space<vmem>>, vector<1x128xf32>
    %115 = vector.shape_cast %114 : vector<1x128xf32> to vector<128xf32>
    %116 = vector.shape_cast %115 : vector<128xf32> to vector<1x1x1x128xf32>
    %117 = vector.broadcast %116 : vector<1x1x1x128xf32> to vector<1x8x8x128xf32>
    %118 = arith.mulf %113, %117 : vector<1x8x8x128xf32>
    %119 = arith.addf %107, %118 : vector<1x8x8x128xf32>
    %cst_32 = arith.constant 0.000000e+00 : f32
    %120 = vector.broadcast %cst_32 : f32 to vector<1x8x8x128xf32>
    %121 = arith.maximumf %119, %120 : vector<1x8x8x128xf32>
    %122 = vector.shape_cast %121 : vector<1x8x8x128xf32> to vector<64x128xf32>
    %123 = arith.truncf %122 : vector<64x128xf32> to vector<64x128xbf16>
    %c0_33 = arith.constant 0 : index
    %c0_34 = arith.constant 0 : index
    %124 = vector.load %arg6[%c0_33, %c0_34] : memref<128x128xbf16, #tpu.memory_space<vmem>>, vector<128x128xbf16>
    %cst_35 = arith.constant dense<0.000000e+00> : vector<64x128xf32>
    %125 = tpu.matmul %123, %124, %cst_35 {dimension_numbers = #tpu.dot_dimension_numbers<[1], [0], [0], [1], [0, 0, 1, 1], [], []>} : vector<64x128xbf16>, vector<128x128xbf16>, vector<64x128xf32> -> vector<64x128xf32>
    %c0_36 = arith.constant 0 : index
    %c0_37 = arith.constant 0 : index
    %126 = vector.load %arg7[%c0_36, %c0_37] : memref<1x128xf32, #tpu.memory_space<vmem>>, vector<1x128xf32>
    %127 = vector.shape_cast %126 : vector<1x128xf32> to vector<128xf32>
    %128 = vector.shape_cast %127 : vector<128xf32> to vector<1x128xf32>
    %129 = vector.broadcast %128 : vector<1x128xf32> to vector<64x128xf32>
    %130 = arith.addf %125, %129 : vector<64x128xf32>
    %c0_38 = arith.constant 0 : index
    %c0_39 = arith.constant 0 : index
    %c0_40 = arith.constant 0 : index
    %c0_41 = arith.constant 0 : index
    %131 = vector.load %arg1[%c0_38, %c0_39, %c0_40, %c0_41] : memref<1x8x8x8xf32, #tpu.memory_space<vmem>>, vector<1x8x8x8xf32>
    %132 = vector.shape_cast %131 : vector<1x8x8x8xf32> to vector<64x8xf32>
    %133 = arith.truncf %132 : vector<64x8xf32> to vector<64x8xbf16>
    %c0_42 = arith.constant 0 : index
    %c0_43 = arith.constant 0 : index
    %134 = vector.load %arg8[%c0_42, %c0_43] : memref<8x128xbf16, #tpu.memory_space<vmem>>, vector<8x128xbf16>
    %cst_44 = arith.constant dense<0.000000e+00> : vector<64x128xf32>
    %135 = tpu.matmul %133, %134, %cst_44 {dimension_numbers = #tpu.dot_dimension_numbers<[1], [0], [0], [1], [0, 0, 1, 1], [], []>} : vector<64x8xbf16>, vector<8x128xbf16>, vector<64x128xf32> -> vector<64x128xf32>
    %136 = arith.addf %130, %135 : vector<64x128xf32>
    %137 = vector.shape_cast %136 : vector<64x128xf32> to vector<1x8x8x128xf32>
    %c0_45 = arith.constant 0 : index
    %c0_46 = arith.constant 0 : index
    %c0_47 = arith.constant 0 : index
    %c0_48 = arith.constant 0 : index
    %138 = vector.load %arg9[%c0_45, %c0_46, %c0_47, %c0_48] : memref<1x8x8x128xf32, #tpu.memory_space<vmem>>, vector<1x8x8x128xf32>
    tpu.vector_store %arg9[%c0_45, %c0_46, %c0_47, %c0_48], %137 {strides = array<i32>} : memref<1x8x8x128xf32, #tpu.memory_space<vmem>>, vector<1x8x8x128xf32>,
    return
  }
  func.func @transform_0(%arg0: i32) -> (i32, i32, i32, i32) {
    %c0_i32 = arith.constant 0 : i32
    %c0_i32_0 = arith.constant 0 : i32
    %c0_i32_1 = arith.constant 0 : i32
    %c0_i32_2 = arith.constant 0 : i32
    return %arg0, %c0_i32, %c0_i32_0, %c0_i32_1 : i32, i32, i32, i32
  }
  func.func @transform_1(%arg0: i32) -> (i32, i32) {
    %c0_i32 = arith.constant 0 : i32
    %c0_i32_0 = arith.constant 0 : i32
    %c0_i32_1 = arith.constant 0 : i32
    return %c0_i32, %c0_i32_0 : i32, i32
  }
  func.func @transform_2(%arg0: i32) -> (i32, i32) {
    %c0_i32 = arith.constant 0 : i32
    %c0_i32_0 = arith.constant 0 : i32
    %c0_i32_1 = arith.constant 0 : i32
    return %c0_i32, %c0_i32_0 : i32, i32
  }
  func.func @transform_3(%arg0: i32) -> (i32, i32) {
    %c0_i32 = arith.constant 0 : i32
    %c0_i32_0 = arith.constant 0 : i32
    %c0_i32_1 = arith.constant 0 : i32
    return %c0_i32, %c0_i32_0 : i32, i32
  }
  func.func @transform_4(%arg0: i32) -> (i32, i32) {
    %c0_i32 = arith.constant 0 : i32
    %c0_i32_0 = arith.constant 0 : i32
    %c0_i32_1 = arith.constant 0 : i32
    return %c0_i32, %c0_i32_0 : i32, i32
  }
  func.func @transform_5(%arg0: i32) -> (i32, i32) {
    %c0_i32 = arith.constant 0 : i32
    %c0_i32_0 = arith.constant 0 : i32
    %c0_i32_1 = arith.constant 0 : i32
    return %c0_i32, %c0_i32_0 : i32, i32
  }
  func.func @transform_6(%arg0: i32) -> (i32, i32) {
    %c0_i32 = arith.constant 0 : i32
    %c0_i32_0 = arith.constant 0 : i32
    %c0_i32_1 = arith.constant 0 : i32
    return %c0_i32, %c0_i32_0 : i32, i32
  }
  func.func @transform_7(%arg0: i32) -> (i32, i32) {
    %c0_i32 = arith.constant 0 : i32
    %c0_i32_0 = arith.constant 0 : i32
    %c0_i32_1 = arith.constant 0 : i32
    return %c0_i32, %c0_i32_0 : i32, i32
  }
  func.func @transform_8(%arg0: i32) -> (i32, i32, i32, i32) {
    %c0_i32 = arith.constant 0 : i32
    %c0_i32_0 = arith.constant 0 : i32
    %c0_i32_1 = arith.constant 0 : i32
    %c0_i32_2 = arith.constant 0 : i32
    return %arg0, %c0_i32, %c0_i32_0, %c0_i32_1 : i32, i32, i32, i32
  }
}

</mosaic_0001>

<llo_original>
// kernel: block_forward.1
$region0: #{block_forward.1}
  #allocation0 [shape = 'u32[]', space=smem, size = 0x4, offset = 0x4, fixed_abs, tag = 'smem constant byte address 0x4 - core index']
  #allocation1 [shape = 'u32[144,128]{1,0:T(1,128)}', space=vmem, size = 0x12000, scoped, tag = 'internal scratch']
  %s0 = inlined_call_operand.hbm [shape: f32[2,8,8,8], index: 0, kind: input, shape index: {}]
  %s1 = inlined_call_operand.vmem [shape: bf16[8,128], index: 1, kind: input, shape index: {}]
  %s2 = inlined_call_operand.vmem [shape: f32[1,128], index: 2, kind: input, shape index: {}]
  %s3 = inlined_call_operand.hbm [shape: f32[9,128], index: 3, kind: input, shape index: {}]
  %s4 = inlined_call_operand.vmem [shape: f32[1,128], index: 4, kind: input, shape index: {}]
  %s5 = inlined_call_operand.hbm [shape: bf16[128,128], index: 5, kind: input, shape index: {}]
  %s6 = inlined_call_operand.vmem [shape: f32[1,128], index: 6, kind: input, shape index: {}]
  %s7 = inlined_call_operand.vmem [shape: bf16[8,128], index: 7, kind: input, shape index: {}]
  %s8 = inlined_call_operand.hbm [shape: f32[2,8,8,128], index: 8, kind: output, shape index: {}]
  %s9 = sld [smem:[#allocation0]]
  $region77: #{block_forward.1} parent=0
    _
  %s11 = ssub.s32 1, %s9
  %s12 = scalar_select 0, %s11, %s9
  $region1: #{block_forward.1} parent=0
    #allocation2 [shape = 'u8[65536]{0}', space=vmem, size = 0x10000, scoped, tag = 'input window, operand 0']
    #allocation3 [shape = 's32[2]{0}', space=sflag, size = 0x8, scoped, tag = 'scoped memory for block_forward.1']
    #allocation4 [shape = 's32[2]{0}', space=sflag, size = 0x8, scoped, tag = 'scoped memory for block_forward.1']
    #allocation5 [shape = 'u8[8192]{0}', space=vmem, size = 0x2000, scoped, tag = 'input window, operand 3, single buffered']
    #allocation6 [shape = 's32[1]{0}', space=sflag, size = 0x4, scoped, tag = 'scoped memory for block_forward.1']
    #allocation7 [shape = 'u8[32768]{0}', space=vmem, size = 0x8000, scoped, tag = 'input window, operand 5, single buffered']
    #allocation8 [shape = 'u8[65536]{0}', space=vmem, size = 0x10000, scoped, tag = 'output window, operand 0']
    %13 = vsyncpa [#allocation3], 0
    %s14 = scalar_lea.sflag [#allocation3], 1
    %15 = vsyncpa %s14, 0
    %16 = vsyncpa [#allocation6], 0
    %17 = vsyncpa [#allocation4], 0
    %s18 = scalar_lea.sflag [#allocation4], 1
    %19 = vsyncpa %s18, 0
    loop: start=0, step=1, limit=4
    $region2: #{block_forward.1} parent=1 // loop_pre_header
      _
    $region3: #{block_forward.1} parent=1 // loop_header
      %s21 = sphi 0, %s25
      %p22 = scmp.ge.s32.totalorder %s21, 4
      %s31 = sphi 0, %s33
      %s34 = sphi 0, %s31
      %s35 = sphi 0, %s34
      %s51 = sphi 0, %s35
      %s55 = sphi 0, %s55
      %s57 = sphi 0, %s55
      %s58 = sphi 0, %s57
      %s72 = sphi 0, %s58
      %s76 = sphi 0, %s76
      %s78 = sphi 0, %s76
      %s79 = sphi 0, %s78
      %s93 = sphi 0, %s79
      %s97 = sphi 0, %s97
      %s99 = sphi 0, %s97
      %s100 = sphi 0, %s99
      %s114 = sphi 0, %s100
      %s118 = sphi 0, %s118
      %s120 = sphi 0, %s118
      %s121 = sphi 0, %s120
      %s135 = sphi 0, %s121
      %s139 = sphi 0, %s139
      %s141 = sphi 0, %s139
      %s142 = sphi 0, %s141
      %s156 = sphi 0, %s142
      %s160 = sphi 0, %s160
      %s162 = sphi 0, %s160
      %s163 = sphi 0, %s162
      %s177 = sphi 0, %s163
      %s181 = sphi 0, %s181
      %s183 = sphi 0, %s181
      %s184 = sphi 0, %s183
      %s198 = sphi 0, %s184
      %s204 = sphi 0, %s206
      %s207 = sphi 0, %s204
      %s208 = sphi 0, %s207
      %s224 = sphi 0, %s208
    $region4: #{block_forward.1} parent=1 // loop_header_branch
      %24 = sbr.rel (%p22) target = $region8
    $region5: #{block_forward.1} parent=1 // loop_body
      %s26 = ssub.s32 %s21, 1
      %s27 = ssub.s32 %s21, 2
      %s28 = sadd.s32 %s21, 1
      %s29 = ssub.s32 %s21, %s28
      %p30 = scmp.eq.s32.totalorder %s29, 0
      %s32 = sadd.s32 %s31, 1
      %s33 = scalar_select %p30, %s31, %s32
      %p36 = pneg %p30
      %p37 = scmp.eq.s32.totalorder %s21, 1
      %p38 = por %p36, %p37
      %p39 = scmp.ne.s32.totalorder %s31, %s34
      %p40 = scmp.eq.s32.totalorder %s21, 0
      %p41 = por %p39, %p40
      %p42 = scmp.ne.s32.totalorder %s31, %s34
      %p43 = scmp.eq.s32.totalorder %s26, 1
      %p44 = por %p42, %p43
      %p45 = scmp.ne.s32.totalorder %s34, %s35
      %p46 = scmp.eq.s32.totalorder %s26, 0
      %p47 = por %p45, %p46
      %p48 = scmp.ne.s32.totalorder %s34, %s35
      %p49 = scmp.eq.s32.totalorder %s27, 1
      %p50 = por %p48, %p49
      %p52 = scmp.ne.s32.totalorder %s35, %s51
      %p53 = scmp.eq.s32.totalorder %s27, 0
      %p54 = por %p52, %p53
      %s56 = sadd.s32 %s55, 1
      %p59 = scmp.eq.s32.totalorder %s21, 1
      %p60 = scmp.ne.s32.totalorder %s55, %s57
      %p61 = scmp.eq.s32.totalorder %s21, 0
      %p62 = por %p60, %p61
      %p63 = scmp.ne.s32.totalorder %s55, %s57
      %p64 = scmp.eq.s32.totalorder %s26, 1
      %p65 = por %p63, %p64
      %p66 = scmp.ne.s32.totalorder %s57, %s58
      %p67 = scmp.eq.s32.totalorder %s26, 0
      %p68 = por %p66, %p67
      %p69 = scmp.ne.s32.totalorder %s57, %s58
      %p70 = scmp.eq.s32.totalorder %s27, 1
      %p71 = por %p69, %p70
      %p73 = scmp.ne.s32.totalorder %s58, %s72
      %p74 = scmp.eq.s32.totalorder %s27, 0
      %p75 = por %p73, %p74
      %s77 = sadd.s32 %s76, 1
      %p80 = scmp.eq.s32.totalorder %s21, 1
      %p81 = scmp.ne.s32.totalorder %s76, %s78
      %p82 = scmp.eq.s32.totalorder %s21, 0
      %p83 = por %p81, %p82
      %p84 = scmp.ne.s32.totalorder %s76, %s78
      %p85 = scmp.eq.s32.totalorder %s26, 1
      %p86 = por %p84, %p85
      %p87 = scmp.ne.s32.totalorder %s78, %s79
      %p88 = scmp.eq.s32.totalorder %s26, 0
      %p89 = por %p87, %p88
      %p90 = scmp.ne.s32.totalorder %s78, %s79
      %p91 = scmp.eq.s32.totalorder %s27, 1
      %p92 = por %p90, %p91
      %p94 = scmp.ne.s32.totalorder %s79, %s93
      %p95 = scmp.eq.s32.totalorder %s27, 0
      %p96 = por %p94, %p95
      %s98 = sadd.s32 %s97, 1
      %p101 = scmp.eq.s32.totalorder %s21, 1
      %p102 = scmp.ne.s32.totalorder %s97, %s99
      %p103 = scmp.eq.s32.totalorder %s21, 0
      %p104 = por %p102, %p103
      %p105 = scmp.ne.s32.totalorder %s97, %s99
      %p106 = scmp.eq.s32.totalorder %s26, 1
      %p107 = por %p105, %p106
      %p108 = scmp.ne.s32.totalorder %s99, %s100
      %p109 = scmp.eq.s32.totalorder %s26, 0
      %p110 = por %p108, %p109
      %p111 = scmp.ne.s32.totalorder %s99, %s100
      %p112 = scmp.eq.s32.totalorder %s27, 1
      %p113 = por %p111, %p112
      %p115 = scmp.ne.s32.totalorder %s100, %s114
      %p116 = scmp.eq.s32.totalorder %s27, 0
      %p117 = por %p115, %p116
      %s119 = sadd.s32 %s118, 1
      %p122 = scmp.eq.s32.totalorder %s21, 1
      %p123 = scmp.ne.s32.totalorder %s118, %s120
      %p124 = scmp.eq.s32.totalorder %s21, 0
      %p125 = por %p123, %p124
      %p126 = scmp.ne.s32.totalorder %s118, %s120
      %p127 = scmp.eq.s32.totalorder %s26, 1
      %p128 = por %p126, %p127
      %p129 = scmp.ne.s32.totalorder %s120, %s121
      %p130 = scmp.eq.s32.totalorder %s26, 0
      %p131 = por %p129, %p130
      %p132 = scmp.ne.s32.totalorder %s120, %s121
      %p133 = scmp.eq.s32.totalorder %s27, 1
      %p134 = por %p132, %p133
      %p136 = scmp.ne.s32.totalorder %s121, %s135
      %p137 = scmp.eq.s32.totalorder %s27, 0
      %p138 = por %p136, %p137
      %s140 = sadd.s32 %s139, 1
      %p143 = scmp.eq.s32.totalorder %s21, 1
      %p144 = scmp.ne.s32.totalorder %s139, %s141
      %p145 = scmp.eq.s32.totalorder %s21, 0
      %p146 = por %p144, %p145
      %p147 = scmp.ne.s32.totalorder %s139, %s141
      %p148 = scmp.eq.s32.totalorder %s26, 1
      %p149 = por %p147, %p148
      %p150 = scmp.ne.s32.totalorder %s141, %s142
      %p151 = scmp.eq.s32.totalorder %s26, 0
      %p152 = por %p150, %p151
      %p153 = scmp.ne.s32.totalorder %s141, %s142
      %p154 = scmp.eq.s32.totalorder %s27, 1
      %p155 = por %p153, %p154
      %p157 = scmp.ne.s32.totalorder %s142, %s156
      %p158 = scmp.eq.s32.totalorder %s27, 0
      %p159 = por %p157, %p158
      %s161 = sadd.s32 %s160, 1
      %p164 = scmp.eq.s32.totalorder %s21, 1
      %p165 = scmp.ne.s32.totalorder %s160, %s162
      %p166 = scmp.eq.s32.totalorder %s21, 0
      %p167 = por %p165, %p166
      %p168 = scmp.ne.s32.totalorder %s160, %s162
      %p169 = scmp.eq.s32.totalorder %s26, 1
      %p170 = por %p168, %p169
      %p171 = scmp.ne.s32.totalorder %s162, %s163
      %p172 = scmp.eq.s32.totalorder %s26, 0
      %p173 = por %p171, %p172
      %p174 = scmp.ne.s32.totalorder %s162, %s163
      %p175 = scmp.eq.s32.totalorder %s27, 1
      %p176 = por %p174, %p175
      %p178 = scmp.ne.s32.totalorder %s163, %s177
      %p179 = scmp.eq.s32.totalorder %s27, 0
      %p180 = por %p178, %p179
      %s182 = sadd.s32 %s181, 1
      %p185 = scmp.eq.s32.totalorder %s21, 1
      %p186 = scmp.ne.s32.totalorder %s181, %s183
      %p187 = scmp.eq.s32.totalorder %s21, 0
      %p188 = por %p186, %p187
      %p189 = scmp.ne.s32.totalorder %s181, %s183
      %p190 = scmp.eq.s32.totalorder %s26, 1
      %p191 = por %p189, %p190
      %p192 = scmp.ne.s32.totalorder %s183, %s184
      %p193 = scmp.eq.s32.totalorder %s26, 0
      %p194 = por %p192, %p193
      %p195 = scmp.ne.s32.totalorder %s183, %s184
      %p196 = scmp.eq.s32.totalorder %s27, 1
      %p197 = por %p195, %p196
      %p199 = scmp.ne.s32.totalorder %s184, %s198
      %p200 = scmp.eq.s32.totalorder %s27, 0
      %p201 = por %p199, %p200
      %s202 = ssub.s32 %s21, %s28
      %p203 = scmp.eq.s32.totalorder %s202, 0
      %s205 = sadd.s32 %s204, 1
      %s206 = scalar_select %p203, %s204, %s205
      %p209 = pneg %p203
      %p210 = scmp.eq.s32.totalorder %s21, 1
      %p211 = por %p209, %p210
      %p212 = scmp.ne.s32.totalorder %s204, %s207
      %p213 = scmp.eq.s32.totalorder %s21, 0
      %p214 = por %p212, %p213
      %p215 = scmp.ne.s32.totalorder %s204, %s207
      %p216 = scmp.eq.s32.totalorder %s26, 1
      %p217 = por %p215, %p216
      %p218 = scmp.ne.s32.totalorder %s207, %s208
      %p219 = scmp.eq.s32.totalorder %s26, 0
      %p220 = por %p218, %p219
      %p221 = scmp.ne.s32.totalorder %s207, %s208
      %p222 = scmp.eq.s32.totalorder %s27, 1
      %p223 = por %p221, %p222
      %p225 = scmp.ne.s32.totalorder %s208, %s224
      %p226 = scmp.eq.s32.totalorder %s27, 0
      %p227 = por %p225, %p226
      %p228 = scmp.le.s32.totalorder 1, %s21
      %p229 = scmp.lt.s32.totalorder %s21, 3
      %p230 = pnand %p228, %p229
      %p231 = pneg %p230
      // Predicated region
      $region9: #{block_forward.1} parent=5 // pred_check
        _
      $region10: #{block_forward.1} parent=5 // pred_check_branch
        %233 = sbr.rel (%p230) target = $region12
      $region11: #{block_forward.1} parent=5 // pred_region
        %s234 = ssub.s32 %s21, 1
        // Predicated region
        $region13: #{block_forward.1} parent=11 // pred_check
          %p235 = pneg %p68
        $region14: #{block_forward.1} parent=11 // pred_check_branch
          %237 = sbr.rel (%p235) target = $region16
        $region15: #{block_forward.1} parent=11 // pred_region
          _
        $region16: #{block_forward.1} parent=11 // pred_fallthru
          _
        // Predicated region
        $region17: #{block_forward.1} parent=11 // pred_check
          %p238 = pneg %p89
        $region18: #{block_forward.1} parent=11 // pred_check_branch
          %240 = sbr.rel (%p238) target = $region20
        $region19: #{block_forward.1} parent=11 // pred_region
          _
        $region20: #{block_forward.1} parent=11 // pred_fallthru
          _
        // Predicated region
        $region21: #{block_forward.1} parent=11 // pred_check
          %p241 = pneg %p110
        $region22: #{block_forward.1} parent=11 // pred_check_branch
          %243 = sbr.rel (%p241) target = $region24
        $region23: #{block_forward.1} parent=11 // pred_region
          %s245 = ssub.s32 256, 256
          %246 = vsyncadd [#allocation6], %s245
          %s247 = sshll.u32 [#allocation5], 4
          %s248 = int_to_ptr.vmem [resolvable:$true] %s247
          %253 = dma.hbm_to_vmem [thread:$0]  %s3, 256, %s248, [#allocation6], 128, 128, 8
        $region24: #{block_forward.1} parent=11 // pred_fallthru
          _
        // Predicated region
        $region25: #{block_forward.1} parent=11 // pred_check
          %p254 = pneg %p131
        $region26: #{block_forward.1} parent=11 // pred_check_branch
          %256 = sbr.rel (%p254) target = $region28
        $region27: #{block_forward.1} parent=11 // pred_region
          _
        $region28: #{block_forward.1} parent=11 // pred_fallthru
          _
        // Predicated region
        $region29: #{block_forward.1} parent=11 // pred_check
          %p257 = pneg %p152
        $region30: #{block_forward.1} parent=11 // pred_check_branch
          %259 = sbr.rel (%p257) target = $region32
        $region31: #{block_forward.1} parent=11 // pred_region
          %s261 = ssub.s32 1024, 1024
          %262 = vsyncadd [#allocation6], %s261
          %s263 = sshll.u32 [#allocation7], 4
          %s264 = int_to_ptr.vmem [resolvable:$true] %s263
          %269 = dma.hbm_to_vmem [thread:$0]  %s5, 1024, %s264, [#allocation6], 64, 64, 4
        $region32: #{block_forward.1} parent=11 // pred_fallthru
          _
        // Predicated region
        $region33: #{block_forward.1} parent=11 // pred_check
          %p270 = pneg %p173
        $region34: #{block_forward.1} parent=11 // pred_check_branch
          %272 = sbr.rel (%p270) target = $region36
        $region35: #{block_forward.1} parent=11 // pred_region
          _
        $region36: #{block_forward.1} parent=11 // pred_fallthru
          _
        // Predicated region
        $region37: #{block_forward.1} parent=11 // pred_check
          %p273 = pneg %p194
        $region38: #{block_forward.1} parent=11 // pred_check_branch
          %275 = sbr.rel (%p273) target = $region40
        $region39: #{block_forward.1} parent=11 // pred_region
          _
        $region40: #{block_forward.1} parent=11 // pred_fallthru
          _
      $region12: #{block_forward.1} parent=5 // pred_fallthru
        _
      %p276 = scmp.lt.s32.totalorder %s21, 2
      // Predicated region
      $region41: #{block_forward.1} parent=5 // pred_check
        %p277 = pneg %p276
      $region42: #{block_forward.1} parent=5 // pred_check_branch
        %279 = sbr.rel (%p277) target = $region44
      $region43: #{block_forward.1} parent=5 // pred_region
        // Predicated region
        $region45: #{block_forward.1} parent=43 // pred_check
          %p280 = pneg %p41
        $region46: #{block_forward.1} parent=43 // pred_check_branch
          %282 = sbr.rel (%p280) target = $region48
        $region47: #{block_forward.1} parent=43 // pred_region
          %s283 = sand.u32 %s31, 1
          %s284 = scalar_lea.sflag [#allocation3], %s283
          %s285 = sand.u32 %s31, 1
          %s286 = smul.addr %s285, 64
          %s287 = scalar_lea.vmem [#allocation2], %s286
          %s289 = ssub.s32 1024, 1024
          %290 = vsyncadd %s284, %s289
          %s291 = smul.addr %s21, 8
          %s292 = smul.addr %s291, 128
          %s293 = scalar_lea.hbm %s0, %s292
          %s294 = sshll.u32 %s287, 4
          %s295 = int_to_ptr.vmem [resolvable:$true] %s294
          %300 = dma.hbm_to_vmem [thread:$0]  %s293, 1024, %s295, %s284, 128, 128, 8
        $region48: #{block_forward.1} parent=43 // pred_fallthru
          _
      $region44: #{block_forward.1} parent=5 // pred_fallthru
        _
      %p301 = scmp.le.s32.totalorder 1, %s21
      %p302 = scmp.lt.s32.totalorder %s21, 3
      %p303 = pnand %p301, %p302
      %p304 = pneg %p303
      // Predicated region
      $region49: #{block_forward.1} parent=5 // pred_check
        _
      $region50: #{block_forward.1} parent=5 // pred_check_branch
        %306 = sbr.rel (%p303) target = $region52
      $region51: #{block_forward.1} parent=5 // pred_region
        %s307 = ssub.s32 %s21, 1
        %s308 = sand.u32 %s34, 1
        %s309 = scalar_lea.sflag [#allocation3], %s308
        %s310 = sand.u32 %s34, 1
        %s311 = smul.addr %s310, 64
        %s312 = scalar_lea.vmem [#allocation2], %s311
        // Predicated region
        $region53: #{block_forward.1} parent=51 // pred_check
          %p313 = pneg %p47
        $region54: #{block_forward.1} parent=51 // pred_check_branch
          %315 = sbr.rel (%p313) target = $region56
        $region55: #{block_forward.1} parent=51 // pred_region
          %316 = dma.done %s309, 1024
        $region56: #{block_forward.1} parent=51 // pred_fallthru
          _
        // Predicated region
        $region57: #{block_forward.1} parent=51 // pred_check
          %p317 = pneg %p110
        $region58: #{block_forward.1} parent=51 // pred_check_branch
          %319 = sbr.rel (%p317) target = $region60
        $region59: #{block_forward.1} parent=51 // pred_region
          %320 = dma.done [#allocation6], 256
        $region60: #{block_forward.1} parent=51 // pred_fallthru
          _
        // Predicated region
        $region61: #{block_forward.1} parent=51 // pred_check
          %p321 = pneg %p152
        $region62: #{block_forward.1} parent=51 // pred_check_branch
          %323 = sbr.rel (%p321) target = $region64
        $region63: #{block_forward.1} parent=51 // pred_region
          %324 = dma.done [#allocation6], 1024
        $region64: #{block_forward.1} parent=51 // pred_fallthru
          _
        %s325 = sand.u32 %s34, 1
        %s326 = scalar_lea.sflag [#allocation3], %s325
        %s327 = sand.u32 %s34, 1
        %s328 = smul.addr %s327, 64
        %s329 = scalar_lea.vmem [#allocation2], %s328
        %p330 = pneg %p47
        %p331 = pneg %p44
        %p332 = pneg %p68
        %p333 = pneg %p65
        %p334 = pneg %p89
        %p335 = pneg %p86
        %p336 = pneg %p110
        %p337 = pneg %p107
        %p338 = pneg %p131
        %p339 = pneg %p128
        %p340 = pneg %p152
        %p341 = pneg %p149
        %p342 = pneg %p173
        %p343 = pneg %p170
        %p344 = pneg %p194
        %p345 = pneg %p191
        %p346 = pneg %p220
        %p347 = pneg %p217
        %s348 = sand.u32 %s207, 1
        %s349 = scalar_lea.sflag [#allocation4], %s348
        %s350 = sand.u32 %s207, 1
        %s351 = smul.addr %s350, 64
        %s352 = scalar_lea.vmem [#allocation8], %s351
        %v354 = vld [vmem:[%s312] sm:$0xff]
        %v355 = vld [vmem:[%s312 + $0x8] sm:$0xff]
        %v356 = vld [vmem:[%s312 + $0x10] sm:$0xff]
        %v357 = vld [vmem:[%s312 + $0x18] sm:$0xff]
        %v358 = vld [vmem:[%s312 + $0x20] sm:$0xff]
        %v359 = vld [vmem:[%s312 + $0x28] sm:$0xff]
        %v360 = vld [vmem:[%s312 + $0x30] sm:$0xff]
        %v361 = vld [vmem:[%s312 + $0x38] sm:$0xff]
        %v362 = vpack.c.bf16 %v355, %v354
        %v363 = vpack.c.bf16 %v357, %v356
        %v364 = vpack.c.bf16 %v359, %v358
        %v365 = vpack.c.bf16 %v361, %v360
        %v366 = vld [vmem:[%s1] sm:$0xf]
        %v367 = vld [vmem:[%s2] sm:$0x1]
        %v369 = vlaneseq
        %v370 = vshrl.u32 %v369, 7
        %v371 = vsub.s32 0, %v370
        %v372 = vrot.slane %v367, %v371
        %vm374 = vcmask 64512
        %v376 = vsel %vm374, %v362, 0
        %v379 = vsel %vm374, %v363, 0
        %v382 = vsel %vm374, %v364, 0
        %v385 = vsel %vm374, %v365, 0
        %vm387 = vcmask 1043456
        %v389 = vsel %vm387, %v366, 0
        %391 = vmatprep.subr.bf16.mxu0 0
        %392 = vmatpush1.bf16.msra.mxu0 %v389
        %393 = vmatprep.subr.bf16.mxu0 0
        %394 = vmatpush1.bf16.msra.mxu0 0
        %395 = vmatprep.subr.bf16.mxu0 0
        %396 = vmatpush1.bf16.msra.mxu0 0
        %397 = vmatprep.subr.bf16.mxu0 0
        %398 = vmatpush1.bf16.msra.mxu0 0
        %399 = vmatprep.subr.bf16.mxu0 0
        %400 = vmatpush1.bf16.msra.mxu0 0
        %401 = vmatprep.subr.bf16.mxu0 0
        %402 = vmatpush1.bf16.msra.mxu0 0
        %403 = vmatprep.subr.bf16.mxu0 0
        %404 = vmatpush1.bf16.msra.mxu0 0
        %405 = vmatprep.subr.bf16.mxu0 0
        %406 = vmatpush1.bf16.msra.mxu0 0
        %407 = vmatprep.subr.bf16.mxu0 0
        %408 = vmatpush1.bf16.msra.mxu0 0
        %409 = vmatprep.subr.bf16.mxu0 0
        %410 = vmatpush1.bf16.msra.mxu0 0
        %411 = vmatprep.subr.bf16.mxu0 0
        %412 = vmatpush1.bf16.msra.mxu0 0
        %413 = vmatprep.subr.bf16.mxu0 0
        %414 = vmatpush1.bf16.msra.mxu0 0
        %415 = vmatprep.subr.bf16.mxu0 0
        %416 = vmatpush1.bf16.msra.mxu0 0
        %417 = vmatprep.subr.bf16.mxu0 0
        %418 = vmatpush1.bf16.msra.mxu0 0
        %419 = vmatprep.subr.bf16.mxu0 0
        %420 = vmatpush1.bf16.msra.mxu0 0
        %421 = vmatprep.subr.bf16.mxu0 0
        %422 = vmatpush1.bf16.msra.mxu0 0
        %423 = vmatprep.mubr.bf16.mxu0 0
        %424 = vmatmul.mubr.bf16.gmra.mrb[0].mxu0 %v376
        %v425 = vpop.f32.mrb[0].mxu0
        %v426 = vadd.f32 %v372, %v425
        %v427 = vpop.f32.mrb[0].mxu0
        %v428 = vpop.f32.mrb[0].mxu0
        %v429 = vadd.f32 %v372, %v428
        %v430 = vpop.f32.mrb[0].mxu0
        %431 = vmatprep.mubr.bf16.mxu0 0
        %432 = vmatmul.mubr.bf16.gmra.mrb[0].mxu0 %v379
        %v433 = vpop.f32.mrb[0].mxu0
        %v434 = vadd.f32 %v372, %v433
        %v435 = vpop.f32.mrb[0].mxu0
        %v436 = vpop.f32.mrb[0].mxu0
        %v437 = vadd.f32 %v372, %v436
        %v438 = vpop.f32.mrb[0].mxu0
        %439 = vmatprep.mubr.bf16.mxu0 0
        %440 = vmatmul.mubr.bf16.gmra.mrb[0].mxu0 %v382
        %v441 = vpop.f32.mrb[0].mxu0
        %v442 = vadd.f32 %v372, %v441
        %v443 = vpop.f32.mrb[0].mxu0
        %v444 = vpop.f32.mrb[0].mxu0
        %v445 = vadd.f32 %v372, %v444
        %v446 = vpop.f32.mrb[0].mxu0
        %447 = vmatprep.mubr.bf16.mxu0 0
        %448 = vmatmul.mubr.bf16.gmra.mrb[0].mxu0 %v385
        %v449 = vpop.f32.mrb[0].mxu0
        %v450 = vadd.f32 %v372, %v449
        %v451 = vpop.f32.mrb[0].mxu0
        %v452 = vpop.f32.mrb[0].mxu0
        %v453 = vadd.f32 %v372, %v452
        %v454 = vpop.f32.mrb[0].mxu0
        %455 = vdwg.mxu0
        %v456 = vmax.f32 %v426, 0.0
        %v457 = vmax.f32 %v429, 0.0
        %v458 = vmax.f32 %v434, 0.0
        %v459 = vmax.f32 %v437, 0.0
        %v460 = vmax.f32 %v442, 0.0
        %v461 = vmax.f32 %v445, 0.0
        %v462 = vmax.f32 %v450, 0.0
        %v463 = vmax.f32 %v453, 0.0
        %v464 = vlaneseq
        %v465 = vshrl.u32 %v464, 7
        %vm466 = vcmp.ge.s32.totalorder %v465, 1
        %vm467 = vcmp.le.s32.totalorder %v465, 6
        %v468 = vld [vmem:[#allocation5 + $0x4] sm:$0x1]
        %v469 = vlaneseq
        %v470 = vshrl.u32 %v469, 7
        %v471 = vsub.s32 0, %v470
        %v472 = vrot.slane %v468, %v471
        %v473 = vmul.f32 %v456, %v472
        %v474 = vmul.f32 %v457, %v472
        %v475 = vmul.f32 %v458, %v472
        %v476 = vmul.f32 %v459, %v472
        %v477 = vmul.f32 %v460, %v472
        %v478 = vmul.f32 %v461, %v472
        %v479 = vmul.f32 %v462, %v472
        %v480 = vmul.f32 %v463, %v472
        %v481 = vld [vmem:[%s4] sm:$0x1]
        %v483 = vlaneseq
        %v484 = vshrl.u32 %v483, 7
        %v485 = vsub.s32 0, %v484
        %v486 = vrot.slane %v481, %v485
        %v488 = vadd.f32 %v473, %v486
        %v489 = vadd.f32 %v474, %v486
        %v490 = vadd.f32 %v475, %v486
        %v491 = vadd.f32 %v476, %v486
        %v492 = vadd.f32 %v477, %v486
        %v493 = vadd.f32 %v478, %v486
        %v494 = vadd.f32 %v479, %v486
        %v495 = vadd.f32 %v480, %v486
        %v496 = vrot.slane %v456, 7
        %v497 = vrot.slane %v457, 7
        %v498 = vrot.slane %v458, 7
        %v499 = vrot.slane %v459, 7
        %v500 = vrot.slane %v460, 7
        %v501 = vrot.slane %v461, 7
        %v502 = vrot.slane %v462, 7
        %v503 = vsel %vm466, 1, 0
        %vm504 = vcmp.eq.s32.totalorder %v503, 1
        %v505 = vsel %vm504, 0.0, 0.0
        %v506 = vsel %vm504, %v496, 0.0
        %v507 = vsel %vm504, %v497, 0.0
        %v508 = vsel %vm504, %v498, 0.0
        %v509 = vsel %vm504, %v499, 0.0
        %v510 = vsel %vm504, %v500, 0.0
        %v511 = vsel %vm504, %v501, 0.0
        %v512 = vsel %vm504, %v502, 0.0
        %v513 = vld [vmem:[#allocation5] sm:$0x1]
        %v514 = vlaneseq
        %v515 = vshrl.u32 %v514, 7
        %v516 = vsub.s32 0, %v515
        %v517 = vrot.slane %v513, %v516
        %v518 = vmul.f32 %v505, %v517
        %v519 = vmul.f32 %v506, %v517
        %v520 = vmul.f32 %v507, %v517
        %v521 = vmul.f32 %v508, %v517
        %v522 = vmul.f32 %v509, %v517
        %v523 = vmul.f32 %v510, %v517
        %v524 = vmul.f32 %v511, %v517
        %v525 = vmul.f32 %v512, %v517
        %v526 = vadd.f32 %v488, %v518
        %v527 = vadd.f32 %v489, %v519
        %v528 = vadd.f32 %v490, %v520
        %v529 = vadd.f32 %v491, %v521
        %v530 = vadd.f32 %v492, %v522
        %v531 = vadd.f32 %v493, %v523
        %v532 = vadd.f32 %v494, %v524
        %v533 = vadd.f32 %v495, %v525
        %v534 = vld [vmem:[#allocation5 + $0x1] sm:$0x1]
        %v535 = vlaneseq
        %v536 = vshrl.u32 %v535, 7
        %v537 = vsub.s32 0, %v536
        %v538 = vrot.slane %v534, %v537
        %v539 = vmul.f32 %v538, 0.0
        %v540 = vmul.f32 %v456, %v538
        %v541 = vmul.f32 %v457, %v538
        %v542 = vmul.f32 %v458, %v538
        %v543 = vmul.f32 %v459, %v538
        %v544 = vmul.f32 %v460, %v538
        %v545 = vmul.f32 %v461, %v538
        %v546 = vmul.f32 %v462, %v538
        %v547 = vadd.f32 %v526, %v539
        %v548 = vadd.f32 %v527, %v540
        %v549 = vadd.f32 %v528, %v541
        %v550 = vadd.f32 %v529, %v542
        %v551 = vadd.f32 %v530, %v543
        %v552 = vadd.f32 %v531, %v544
        %v553 = vadd.f32 %v532, %v545
        %v554 = vadd.f32 %v533, %v546
        %v555 = vrot.slane %v456, 1
        %v556 = vrot.slane %v457, 1
        %v557 = vrot.slane %v458, 1
        %v558 = vrot.slane %v459, 1
        %v559 = vrot.slane %v460, 1
        %v560 = vrot.slane %v461, 1
        %v561 = vrot.slane %v462, 1
        %v562 = vsel %vm467, 1, 0
        %vm563 = vcmp.eq.s32.totalorder %v562, 1
        %v564 = vsel %vm563, 0.0, 0.0
        %v565 = vsel %vm563, %v555, 0.0
        %v566 = vsel %vm563, %v556, 0.0
        %v567 = vsel %vm563, %v557, 0.0
        %v568 = vsel %vm563, %v558, 0.0
        %v569 = vsel %vm563, %v559, 0.0
        %v570 = vsel %vm563, %v560, 0.0
        %v571 = vsel %vm563, %v561, 0.0
        %v572 = vld [vmem:[#allocation5 + $0x2] sm:$0x1]
        %v573 = vlaneseq
        %v574 = vshrl.u32 %v573, 7
        %v575 = vsub.s32 0, %v574
        %v576 = vrot.slane %v572, %v575
        %v577 = vmul.f32 %v564, %v576
        %v578 = vmul.f32 %v565, %v576
        %v579 = vmul.f32 %v566, %v576
        %v580 = vmul.f32 %v567, %v576
        %v581 = vmul.f32 %v568, %v576
        %v582 = vmul.f32 %v569, %v576
        %v583 = vmul.f32 %v570, %v576
        %v584 = vmul.f32 %v571, %v576
        %v585 = vadd.f32 %v547, %v577
        %v586 = vadd.f32 %v548, %v578
        %v587 = vadd.f32 %v549, %v579
        %v588 = vadd.f32 %v550, %v580
        %v589 = vadd.f32 %v551, %v581
        %v590 = vadd.f32 %v552, %v582
        %v591 = vadd.f32 %v553, %v583
        %v592 = vadd.f32 %v554, %v584
        %v593 = vrot.slane %v463, 7
        %v594 = vsel %vm504, %v593, 0.0
        %v595 = vld [vmem:[#allocation5 + $0x3] sm:$0x1]
        %v596 = vlaneseq
        %v597 = vshrl.u32 %v596, 7
        %v598 = vsub.s32 0, %v597
        %v599 = vrot.slane %v595, %v598
        %v600 = vmul.f32 %v506, %v599
        %v601 = vmul.f32 %v507, %v599
        %v602 = vmul.f32 %v508, %v599
        %v603 = vmul.f32 %v509, %v599
        %v604 = vmul.f32 %v510, %v599
        %v605 = vmul.f32 %v511, %v599
        %v606 = vmul.f32 %v512, %v599
        %v607 = vmul.f32 %v594, %v599
        %v608 = vadd.f32 %v585, %v600
        %v609 = vadd.f32 %v586, %v601
        %v610 = vadd.f32 %v587, %v602
        %v611 = vadd.f32 %v588, %v603
        %v612 = vadd.f32 %v589, %v604
        %v613 = vadd.f32 %v590, %v605
        %v614 = vadd.f32 %v591, %v606
        %v615 = vadd.f32 %v592, %v607
        %v616 = vrot.slane %v463, 1
        %v617 = vsel %vm563, %v616, 0.0
        %v618 = vld [vmem:[#allocation5 + $0x5] sm:$0x1]
        %v619 = vlaneseq
        %v620 = vshrl.u32 %v619, 7
        %v621 = vsub.s32 0, %v620
        %v622 = vrot.slane %v618, %v621
        %v623 = vmul.f32 %v565, %v622
        %v624 = vmul.f32 %v566, %v622
        %v625 = vmul.f32 %v567, %v622
        %v626 = vmul.f32 %v568, %v622
        %v627 = vmul.f32 %v569, %v622
        %v628 = vmul.f32 %v570, %v622
        %v629 = vmul.f32 %v571, %v622
        %v630 = vmul.f32 %v617, %v622
        %v631 = vadd.f32 %v608, %v623
        %v632 = vadd.f32 %v609, %v624
        %v633 = vadd.f32 %v610, %v625
        %v634 = vadd.f32 %v611, %v626
        %v635 = vadd.f32 %v612, %v627
        %v636 = vadd.f32 %v613, %v628
        %v637 = vadd.f32 %v614, %v629
        %v638 = vadd.f32 %v615, %v630
        %v639 = vld [vmem:[#allocation5 + $0x6] sm:$0x1]
        %v640 = vlaneseq
        %v641 = vshrl.u32 %v640, 7
        %v642 = vsub.s32 0, %v641
        %v643 = vrot.slane %v639, %v642
        %v644 = vmul.f32 %v507, %v643
        %v645 = vmul.f32 %v508, %v643
        %v646 = vmul.f32 %v509, %v643
        %v647 = vmul.f32 %v510, %v643
        %v648 = vmul.f32 %v511, %v643
        %v649 = vmul.f32 %v512, %v643
        %v650 = vmul.f32 %v594, %v643
        %v651 = vmul.f32 %v505, %v643
        %v652 = vadd.f32 %v631, %v644
        %v653 = vadd.f32 %v632, %v645
        %v654 = vadd.f32 %v633, %v646
        %v655 = vadd.f32 %v634, %v647
        %v656 = vadd.f32 %v635, %v648
        %v657 = vadd.f32 %v636, %v649
        %v658 = vadd.f32 %v637, %v650
        %v659 = vadd.f32 %v638, %v651
        %v660 = vld [vmem:[#allocation5 + $0x7] sm:$0x1]
        %v661 = vlaneseq
        %v662 = vshrl.u32 %v661, 7
        %v663 = vsub.s32 0, %v662
        %v664 = vrot.slane %v660, %v663
        %v665 = vmul.f32 %v457, %v664
        %v666 = vmul.f32 %v458, %v664
        %v667 = vmul.f32 %v459, %v664
        %v668 = vmul.f32 %v460, %v664
        %v669 = vmul.f32 %v461, %v664
        %v670 = vmul.f32 %v462, %v664
        %v671 = vmul.f32 %v463, %v664
        %v672 = vmul.f32 %v664, 0.0
        %v673 = vadd.f32 %v652, %v665
        %v674 = vadd.f32 %v653, %v666
        %v675 = vadd.f32 %v654, %v667
        %v676 = vadd.f32 %v655, %v668
        %v677 = vadd.f32 %v656, %v669
        %v678 = vadd.f32 %v657, %v670
        %v679 = vadd.f32 %v658, %v671
        %v680 = vadd.f32 %v659, %v672
        %v681 = vld [vmem:[#allocation5 + $0x8] sm:$0x1]
        %v682 = vlaneseq
        %v683 = vshrl.u32 %v682, 7
        %v684 = vsub.s32 0, %v683
        %v685 = vrot.slane %v681, %v684
        %v686 = vmul.f32 %v566, %v685
        %v687 = vmul.f32 %v567, %v685
        %v688 = vmul.f32 %v568, %v685
        %v689 = vmul.f32 %v569, %v685
        %v690 = vmul.f32 %v570, %v685
        %v691 = vmul.f32 %v571, %v685
        %v692 = vmul.f32 %v617, %v685
        %v693 = vmul.f32 %v564, %v685
        %v694 = vadd.f32 %v673, %v686
        %v695 = vadd.f32 %v674, %v687
        %v696 = vadd.f32 %v675, %v688
        %v697 = vadd.f32 %v676, %v689
        %v698 = vadd.f32 %v677, %v690
        %v699 = vadd.f32 %v678, %v691
        %v700 = vadd.f32 %v679, %v692
        %v701 = vadd.f32 %v680, %v693
        %v702 = vmax.f32 %v694, 0.0
        %v703 = vmax.f32 %v695, 0.0
        %v704 = vmax.f32 %v696, 0.0
        %v705 = vmax.f32 %v697, 0.0
        %v706 = vmax.f32 %v698, 0.0
        %v707 = vmax.f32 %v699, 0.0
        %v708 = vmax.f32 %v700, 0.0
        %v709 = vmax.f32 %v701, 0.0
        %v710 = vpack.c.bf16 %v703, %v702
        %v711 = vpack.c.bf16 %v705, %v704
        %v712 = vpack.c.bf16 %v707, %v706
        %v713 = vpack.c.bf16 %v709, %v708
        %v714 = vld [vmem:[#allocation7] sm:$0xf]
        %v715 = vld [vmem:[#allocation7 + $0x4] sm:$0xf]
        %v716 = vld [vmem:[#allocation7 + $0x8] sm:$0xf]
        %v717 = vld [vmem:[#allocation7 + $0xc] sm:$0xf]
        %v718 = vld [vmem:[#allocation7 + $0x10] sm:$0xf]
        %v719 = vld [vmem:[#allocation7 + $0x14] sm:$0xf]
        %v720 = vld [vmem:[#allocation7 + $0x18] sm:$0xf]
        %v721 = vld [vmem:[#allocation7 + $0x1c] sm:$0xf]
        %v722 = vld [vmem:[#allocation7 + $0x20] sm:$0xf]
        %v723 = vld [vmem:[#allocation7 + $0x24] sm:$0xf]
        %v724 = vld [vmem:[#allocation7 + $0x28] sm:$0xf]
        %v725 = vld [vmem:[#allocation7 + $0x2c] sm:$0xf]
        %v726 = vld [vmem:[#allocation7 + $0x30] sm:$0xf]
        %v727 = vld [vmem:[#allocation7 + $0x34] sm:$0xf]
        %v728 = vld [vmem:[#allocation7 + $0x38] sm:$0xf]
        %v729 = vld [vmem:[#allocation7 + $0x3c] sm:$0xf]
        %v730 = vld [vmem:[%s6] sm:$0x1]
        %v732 = vlaneseq
        %v733 = vshrl.u32 %v732, 7
        %v734 = vsub.s32 0, %v733
        %v735 = vrot.slane %v730, %v734
        %v753 = vunpack.c.l.b16 %v714
        %v754 = vunpack.c.l.b16 %v715
        %v755 = vunpack.c.l.b16 %v716
        %v756 = vunpack.c.l.b16 %v717
        %v757 = vunpack.c.l.b16 %v718
        %v758 = vunpack.c.l.b16 %v719
        %v759 = vunpack.c.l.b16 %v720
        %v760 = vunpack.c.l.b16 %v721
        %v761 = vunpack.c.l.b16 %v722
        %v762 = vunpack.c.l.b16 %v723
        %v763 = vunpack.c.l.b16 %v724
        %v764 = vunpack.c.l.b16 %v725
        %v765 = vunpack.c.l.b16 %v726
        %v766 = vunpack.c.l.b16 %v727
        %v767 = vunpack.c.l.b16 %v728
        %v768 = vunpack.c.l.b16 %v729
        %v769 = vpack.c.b16 %v754, %v753
        %v770 = vpack.c.b16 %v756, %v755
        %v771 = vpack.c.b16 %v758, %v757
        %v772 = vpack.c.b16 %v760, %v759
        %v773 = vpack.c.b16 %v762, %v761
        %v774 = vpack.c.b16 %v764, %v763
        %v775 = vpack.c.b16 %v766, %v765
        %v776 = vpack.c.b16 %v768, %v767
        %785 = vmatprep.subr.bf16.mxu0 0
        %786 = vmatpush1.bf16.msra.mxu0 %v769
        %787 = vmatprep.subr.bf16.mxu0 0
        %788 = vmatpush1.bf16.msra.mxu0 %v770
        %789 = vmatprep.subr.bf16.mxu0 0
        %790 = vmatpush1.bf16.msra.mxu0 %v771
        %791 = vmatprep.subr.bf16.mxu0 0
        %792 = vmatpush1.bf16.msra.mxu0 %v772
        %793 = vmatprep.subr.bf16.mxu0 0
        %794 = vmatpush1.bf16.msra.mxu0 %v773
        %795 = vmatprep.subr.bf16.mxu0 0
        %796 = vmatpush1.bf16.msra.mxu0 %v774
        %797 = vmatprep.subr.bf16.mxu0 0
        %798 = vmatpush1.bf16.msra.mxu0 %v775
        %799 = vmatprep.subr.bf16.mxu0 0
        %800 = vmatpush1.bf16.msra.mxu0 %v776
        %801 = vmatprep.subr.bf16.mxu0 0
        %802 = vmatpush1.bf16.msra.mxu0 0
        %803 = vmatprep.subr.bf16.mxu0 0
        %804 = vmatpush1.bf16.msra.mxu0 0
        %805 = vmatprep.subr.bf16.mxu0 0
        %806 = vmatpush1.bf16.msra.mxu0 0
        %807 = vmatprep.subr.bf16.mxu0 0
        %808 = vmatpush1.bf16.msra.mxu0 0
        %809 = vmatprep.subr.bf16.mxu0 0
        %810 = vmatpush1.bf16.msra.mxu0 0
        %811 = vmatprep.subr.bf16.mxu0 0
        %812 = vmatpush1.bf16.msra.mxu0 0
        %813 = vmatprep.subr.bf16.mxu0 0
        %814 = vmatpush1.bf16.msra.mxu0 0
        %815 = vmatprep.subr.bf16.mxu0 0
        %816 = vmatpush1.bf16.msra.mxu0 0
        %817 = vmatprep.mubr.bf16.mxu0 0
        %818 = vmatmul.mubr.bf16.gmra.mrb[0].mxu0 %v710
        %v819 = vpop.f32.mrb[0].mxu0
        %v820 = vadd.f32 %v735, %v819
        %v821 = vpop.f32.mrb[0].mxu0
        %v822 = vpop.f32.mrb[0].mxu0
        %v823 = vadd.f32 %v735, %v822
        %v824 = vpop.f32.mrb[0].mxu0
        %825 = vmatprep.mubr.bf16.mxu0 0
        %826 = vmatmul.mubr.bf16.gmra.mrb[0].mxu0 %v711
        %v827 = vpop.f32.mrb[0].mxu0
        %v828 = vadd.f32 %v735, %v827
        %v829 = vpop.f32.mrb[0].mxu0
        %v830 = vpop.f32.mrb[0].mxu0
        %v831 = vadd.f32 %v735, %v830
        %v832 = vpop.f32.mrb[0].mxu0
        %833 = vmatprep.mubr.bf16.mxu0 0
        %834 = vmatmul.mubr.bf16.gmra.mrb[0].mxu0 %v712
        %v835 = vpop.f32.mrb[0].mxu0
        %v836 = vadd.f32 %v735, %v835
        %v837 = vpop.f32.mrb[0].mxu0
        %v838 = vpop.f32.mrb[0].mxu0
        %v839 = vadd.f32 %v735, %v838
        %v840 = vpop.f32.mrb[0].mxu0
        %841 = vmatprep.mubr.bf16.mxu0 0
        %842 = vmatmul.mubr.bf16.gmra.mrb[0].mxu0 %v713
        %v843 = vpop.f32.mrb[0].mxu0
        %v844 = vadd.f32 %v735, %v843
        %v845 = vpop.f32.mrb[0].mxu0
        %v846 = vpop.f32.mrb[0].mxu0
        %v847 = vadd.f32 %v735, %v846
        %v848 = vpop.f32.mrb[0].mxu0
        %849 = vdwg.mxu0
        %v850 = vld [vmem:[%s7] sm:$0xf]
        %v852 = vsel %vm387, %v850, 0
        %854 = vmatprep.subr.bf16.mxu0 0
        %855 = vmatpush1.bf16.msra.mxu0 %v852
        %856 = vmatprep.subr.bf16.mxu0 0
        %857 = vmatpush1.bf16.msra.mxu0 0
        %858 = vmatprep.subr.bf16.mxu0 0
        %859 = vmatpush1.bf16.msra.mxu0 0
        %860 = vmatprep.subr.bf16.mxu0 0
        %861 = vmatpush1.bf16.msra.mxu0 0
        %862 = vmatprep.subr.bf16.mxu0 0
        %863 = vmatpush1.bf16.msra.mxu0 0
        %864 = vmatprep.subr.bf16.mxu0 0
        %865 = vmatpush1.bf16.msra.mxu0 0
        %866 = vmatprep.subr.bf16.mxu0 0
        %867 = vmatpush1.bf16.msra.mxu0 0
        %868 = vmatprep.subr.bf16.mxu0 0
        %869 = vmatpush1.bf16.msra.mxu0 0
        %870 = vmatprep.subr.bf16.mxu0 0
        %871 = vmatpush1.bf16.msra.mxu0 0
        %872 = vmatprep.subr.bf16.mxu0 0
        %873 = vmatpush1.bf16.msra.mxu0 0
        %874 = vmatprep.subr.bf16.mxu0 0
        %875 = vmatpush1.bf16.msra.mxu0 0
        %876 = vmatprep.subr.bf16.mxu0 0
        %877 = vmatpush1.bf16.msra.mxu0 0
        %878 = vmatprep.subr.bf16.mxu0 0
        %879 = vmatpush1.bf16.msra.mxu0 0
        %880 = vmatprep.subr.bf16.mxu0 0
        %881 = vmatpush1.bf16.msra.mxu0 0
        %882 = vmatprep.subr.bf16.mxu0 0
        %883 = vmatpush1.bf16.msra.mxu0 0
        %884 = vmatprep.subr.bf16.mxu0 0
        %885 = vmatpush1.bf16.msra.mxu0 0
        %886 = vmatprep.mubr.bf16.mxu0 0
        %887 = vmatmul.mubr.bf16.gmra.mrb[0].mxu0 %v376
        %v888 = vpop.f32.mrb[0].mxu0
        %v889 = vadd.f32 0.0, %v888
        %v890 = vpop.f32.mrb[0].mxu0
        %v891 = vpop.f32.mrb[0].mxu0
        %v892 = vadd.f32 0.0, %v891
        %v893 = vpop.f32.mrb[0].mxu0
        %894 = vmatprep.mubr.bf16.mxu0 0
        %895 = vmatmul.mubr.bf16.gmra.mrb[0].mxu0 %v379
        %v896 = vpop.f32.mrb[0].mxu0
        %v897 = vadd.f32 0.0, %v896
        %v898 = vpop.f32.mrb[0].mxu0
        %v899 = vpop.f32.mrb[0].mxu0
        %v900 = vadd.f32 0.0, %v899
        %v901 = vpop.f32.mrb[0].mxu0
        %902 = vmatprep.mubr.bf16.mxu0 0
        %903 = vmatmul.mubr.bf16.gmra.mrb[0].mxu0 %v382
        %v904 = vpop.f32.mrb[0].mxu0
        %v905 = vadd.f32 0.0, %v904
        %v906 = vpop.f32.mrb[0].mxu0
        %v907 = vpop.f32.mrb[0].mxu0
        %v908 = vadd.f32 0.0, %v907
        %v909 = vpop.f32.mrb[0].mxu0
        %910 = vmatprep.mubr.bf16.mxu0 0
        %911 = vmatmul.mubr.bf16.gmra.mrb[0].mxu0 %v385
        %v912 = vpop.f32.mrb[0].mxu0
        %v913 = vadd.f32 0.0, %v912
        %v914 = vpop.f32.mrb[0].mxu0
        %v915 = vpop.f32.mrb[0].mxu0
        %v916 = vadd.f32 0.0, %v915
        %v917 = vpop.f32.mrb[0].mxu0
        %918 = vdwg.mxu0
        %v919 = vadd.f32 %v820, %v889
        %v920 = vadd.f32 %v823, %v892
        %v921 = vadd.f32 %v828, %v897
        %v922 = vadd.f32 %v831, %v900
        %v923 = vadd.f32 %v836, %v905
        %v924 = vadd.f32 %v839, %v908
        %v925 = vadd.f32 %v844, %v913
        %v926 = vadd.f32 %v847, %v916
        %927 = vst [vmem:[%s352] sm:$0xff] %v919
        %928 = vst [vmem:[%s352 + $0x8] sm:$0xff] %v920
        %929 = vst [vmem:[%s352 + $0x10] sm:$0xff] %v921
        %930 = vst [vmem:[%s352 + $0x18] sm:$0xff] %v922
        %931 = vst [vmem:[%s352 + $0x20] sm:$0xff] %v923
        %932 = vst [vmem:[%s352 + $0x28] sm:$0xff] %v924
        %933 = vst [vmem:[%s352 + $0x30] sm:$0xff] %v925
        %934 = vst [vmem:[%s352 + $0x38] sm:$0xff] %v926
        %s935 = sand.u32 %s207, 1
        %s936 = scalar_lea.sflag [#allocation4], %s935
        %s937 = sand.u32 %s207, 1
        %s938 = smul.addr %s937, 64
        %s939 = scalar_lea.vmem [#allocation8], %s938
        // Predicated region
        $region65: #{block_forward.1} parent=51 // pred_check
          %p940 = pneg %p217
        $region66: #{block_forward.1} parent=51 // pred_check_branch
          %942 = sbr.rel (%p940) target = $region68
        $region67: #{block_forward.1} parent=51 // pred_region
          %s944 = ssub.s32 1024, 1024
          %945 = vsyncadd %s936, %s944
          %s946 = smul.addr %s26, 8
          %s947 = smul.addr %s946, 128
          %s948 = scalar_lea.hbm %s8, %s947
          %s949 = sshll.u32 %s939, 4
          %s950 = int_to_ptr.vmem [resolvable:$true] %s949
          %955 = dma.vmem_to_hbm [thread:$0]  %s950, 1024, %s948, %s936, 128, 128, 8
        $region68: #{block_forward.1} parent=51 // pred_fallthru
          _
      $region52: #{block_forward.1} parent=5 // pred_fallthru
        _
      %p956 = scmp.le.s32.totalorder 2, %s21
      // Predicated region
      $region69: #{block_forward.1} parent=5 // pred_check
        %p957 = pneg %p956
      $region70: #{block_forward.1} parent=5 // pred_check_branch
        %959 = sbr.rel (%p957) target = $region72
      $region71: #{block_forward.1} parent=5 // pred_region
        %s960 = ssub.s32 %s21, 2
        // Predicated region
        $region73: #{block_forward.1} parent=71 // pred_check
          %p961 = pneg %p223
        $region74: #{block_forward.1} parent=71 // pred_check_branch
          %963 = sbr.rel (%p961) target = $region76
        $region75: #{block_forward.1} parent=71 // pred_region
          %s964 = sand.u32 %s208, 1
          %s965 = scalar_lea.sflag [#allocation4], %s964
          %s966 = sand.u32 %s208, 1
          %s967 = smul.addr %s966, 64
          %s968 = scalar_lea.vmem [#allocation8], %s967
          %969 = dma.done %s965, 1024
        $region76: #{block_forward.1} parent=71 // pred_fallthru
          _
      $region72: #{block_forward.1} parent=5 // pred_fallthru
        _
    $region6: #{block_forward.1} parent=1 // loop_footer
      %s25 = sadd.s32 1, %s21
    $region7: #{block_forward.1} parent=1 // loop_footer_branch
      %20 = sbr.rel target = $region3
    $region8: #{block_forward.1} parent=1 // loop_exit
      _
    %970 = vsyncpa [#allocation3], 1
    %s971 = scalar_lea.sflag [#allocation3], 1
    %972 = vsyncpa %s971, 1
    %973 = vsyncpa [#allocation6], 1
    %974 = vsyncpa [#allocation4], 1
    %s975 = scalar_lea.sflag [#allocation4], 1
    %976 = vsyncpa %s975, 1

</llo_original>
